<compile_context>
chip_gen: v7x
topology: tpu7x:2x2x1
jax: 0.10.0
libtpu: 0.0.40
codegen_flags: <defaults>
</compile_context>

<pallas_src>
import jax
import jax.numpy as jnp
from jax.experimental import pallas as pl
from jax.experimental.pallas import tpu as pltpu


# ---------------- module config (small shapes consistent with the module) -----
IMG_SIZE = 16
PATCH_SIZE = 4
IN_CHANNELS = 4
EMBED_DIM = 64
N_PATCHES = (IMG_SIZE // PATCH_SIZE) ** 2          # 16
PATCH_DIM = IN_CHANNELS * PATCH_SIZE * PATCH_SIZE  # 64
BATCH = 2

LANE = 128
# Pack PACK consecutive tokens per kernel row so K and N are full 128-lane wide.
PACK = LANE // EMBED_DIM if (EMBED_DIM < LANE and LANE % EMBED_DIM == 0) else 1   # 2
M_TOKENS = BATCH * N_PATCHES                        # 32
assert M_TOKENS % PACK == 0


# ------------------------------ kernel ----------------------------------------
def patch_embed_kernel(p_ref, w_ref, b_ref, o_ref):
    # p_ref: (M/PACK, PACK*PATCH_DIM) bf16   w_ref: (PACK*PATCH_DIM, PACK*EMBED_DIM) bf16
    # b_ref: (1, PACK*EMBED_DIM) f32         o_ref: (M/PACK, PACK*EMBED_DIM) f32
    acc = jnp.dot(p_ref[...], w_ref[...], preferred_element_type=jnp.float32)
    o_ref[...] = acc + b_ref[...]              # bias add in f32, lane-dense store


# ------------------------------ wrappers ---------------------------------------
def extract_patches(x):
    # x: (B, C, H, W) NCHW -> (B*n_patches, C*P*P).  Patch flattening order
    # (c, ph, pw) matches Conv2d weight (E, C, P, P).reshape(E, -1).
    B, C, H, W = x.shape
    gh, gw = H // PATCH_SIZE, W // PATCH_SIZE
    x = x.reshape(B, C, gh, PATCH_SIZE, gw, PATCH_SIZE)
    x = jnp.transpose(x, (0, 2, 4, 1, 3, 5))        # (B, gh, gw, C, P, P)
    return x.reshape(B * gh * gw, C * PATCH_SIZE * PATCH_SIZE)


def prepare_params(w, b):
    # One-time (init-time) parameter prep, outside the jitted forward path.
    #   w: (PATCH_DIM, EMBED_DIM) f32 (Conv2d weight pre-transposed), b: (EMBED_DIM,) f32.
    # Block-diagonal replication so PACK tokens share one full-lane matmul.
    w_bd = jnp.zeros((PACK * PATCH_DIM, PACK * EMBED_DIM), jnp.float32)
    for g in range(PACK):
        w_bd = w_bd.at[g * PATCH_DIM:(g + 1) * PATCH_DIM,
                       g * EMBED_DIM:(g + 1) * EMBED_DIM].set(w)
    w_bd = w_bd.astype(jnp.bfloat16)                       # bf16 MXU operand
    b_pack = jnp.tile(b.reshape(1, EMBED_DIM), (1, PACK)).astype(jnp.float32)
    return w_bd, b_pack


def patch_embed(patch_pairs, w_bd, b_pack):
    # patch_pairs: (M/PACK, PACK*PATCH_DIM) bf16
    Mp, _ = patch_pairs.shape
    Np = w_bd.shape[1]
    vmem = pl.BlockSpec(memory_space=pltpu.MemorySpace.VMEM)
    return pl.pallas_call(
        patch_embed_kernel,
        out_shape=jax.ShapeDtypeStruct((Mp, Np), jnp.float32),
        in_specs=[vmem, vmem, vmem],                 # whole arrays, VMEM-resident
        out_specs=vmem,                              # lane-dense (M/PACK, 128) slab
    )(patch_pairs, w_bd, b_pack)


@jax.jit
def patch_embedding_forward(x, w_bd, b_pack):
    B = x.shape[0]
    patches = extract_patches(x).astype(jnp.bfloat16)        # (M, PATCH_DIM) bf16
    pairs = patches.reshape(M_TOKENS // PACK, PACK * PATCH_DIM)   # free reshape
    out_pairs = patch_embed(pairs, w_bd, b_pack)              # Pallas: matmul + bias
    return out_pairs.reshape(B, N_PATCHES, EMBED_DIM)         # free reshape back


# ------------------------------ main -------------------------------------------
if __name__ == "__main__":
    key = jax.random.PRNGKey(0)
    kx, kw, kb = jax.random.split(key, 3)
    x = jax.random.normal(kx, (BATCH, IN_CHANNELS, IMG_SIZE, IMG_SIZE), jnp.float32)
    # Conv2d weight (E, C, P, P) stored pre-transposed as (C*P*P, E); bias as (E,).
    w = 0.02 * jax.random.normal(kw, (PATCH_DIM, EMBED_DIM), jnp.float32)
    b = 0.1 * jax.random.normal(kb, (EMBED_DIM,), jnp.float32)

    w_bd, b_pack = prepare_params(w, b)            # init-time, not per forward

    out = patch_embedding_forward(x, w_bd, b_pack)
    out = jax.block_until_ready(out)
    assert out.shape == (BATCH, N_PATCHES, EMBED_DIM), out.shape
    assert bool(jnp.all(jnp.isfinite(out)))

    # Cross-check against the actual Conv2d-equivalent (validates patch ordering,
    # token packing, block-diagonal weight, and bias). f32 reference vs bf16 operands.
    conv_w = jnp.transpose(w, (1, 0)).reshape(EMBED_DIM, IN_CHANNELS, PATCH_SIZE, PATCH_SIZE)
    ref = jax.lax.conv_general_dilated(
        x, conv_w, window_strides=(PATCH_SIZE, PATCH_SIZE), padding="VALID",
        dimension_numbers=("NCHW", "OIHW", "NCHW"))
    ref = ref.reshape(BATCH, EMBED_DIM, N_PATCHES).transpose(0, 2, 1) + b.reshape(1, 1, EMBED_DIM)
    assert bool(jnp.allclose(out, ref, atol=2e-2, rtol=2e-2))

    print("KERNEL_OK")
</pallas_src>

<mosaic_0001>
module attributes {stable_mosaic.version = 11 : i64} {
  func.func @patch_embed_kernel(%arg0: memref<16x128xbf16, #tpu.memory_space<vmem>>, %arg1: memref<128x128xbf16, #tpu.memory_space<vmem>>, %arg2: memref<1x128xf32, #tpu.memory_space<vmem>>, %arg3: memref<16x128xf32, #tpu.memory_space<vmem>>) attributes {dimension_semantics = [], scalar_prefetch = 0 : i64, scratch_operands = 0 : i64, tpu.core_type = #tpu.core_type<tc>} {
    %c0 = arith.constant 0 : index
    %c0_0 = arith.constant 0 : index
    %0 = vector.load %arg0[%c0, %c0_0] : memref<16x128xbf16, #tpu.memory_space<vmem>>, vector<16x128xbf16>
    %c0_1 = arith.constant 0 : index
    %c0_2 = arith.constant 0 : index
    %1 = vector.load %arg1[%c0_1, %c0_2] : memref<128x128xbf16, #tpu.memory_space<vmem>>, vector<128x128xbf16>
    %cst = arith.constant dense<0.000000e+00> : vector<16x128xf32>
    %2 = tpu.matmul %0, %1, %cst {dimension_numbers = #tpu.dot_dimension_numbers<[1], [0], [0], [1], [0, 0, 1, 1], [], []>} : vector<16x128xbf16>, vector<128x128xbf16>, vector<16x128xf32> -> vector<16x128xf32>
    %c0_3 = arith.constant 0 : index
    %c0_4 = arith.constant 0 : index
    %3 = vector.load %arg2[%c0_3, %c0_4] : memref<1x128xf32, #tpu.memory_space<vmem>>, vector<1x128xf32>
    %4 = vector.broadcast %3 : vector<1x128xf32> to vector<16x128xf32>
    %5 = arith.addf %2, %4 : vector<16x128xf32>
    %c0_5 = arith.constant 0 : index
    %c0_6 = arith.constant 0 : index
    %6 = vector.load %arg3[%c0_5, %c0_6] : memref<16x128xf32, #tpu.memory_space<vmem>>, vector<16x128xf32>
    tpu.vector_store %arg3[%c0_5, %c0_6], %5 {strides = array<i32>} : memref<16x128xf32, #tpu.memory_space<vmem>>, vector<16x128xf32>,
    return
  }
}

</mosaic_0001>

<llo_original>
// kernel: patch_embedding_forward.1
$region0: #{patch_embedding_forward.1}
  #allocation0 [shape = 'u32[]', space=smem, size = 0x4, offset = 0x4, fixed_abs, tag = 'smem constant byte address 0x4 - core index']
  #allocation1 [shape = 'u32[144,128]{1,0:T(1,128)}', space=vmem, size = 0x12000, scoped, tag = 'internal scratch']
  %s0 = inlined_call_operand.vmem [shape: bf16[16,128], index: 0, kind: input, shape index: {}]
  %s1 = inlined_call_operand.vmem [shape: bf16[128,128], index: 1, kind: input, shape index: {}]
  %s2 = inlined_call_operand.vmem [shape: f32[1,128], index: 2, kind: input, shape index: {}]
  %s3 = inlined_call_operand.vmem [shape: f32[16,128], index: 3, kind: output, shape index: {}]
  %s4 = sld [smem:[#allocation0]]
  $region22: #{patch_embedding_forward.1} parent=0
    _
  %s6 = ssub.s32 1, %s4
  %s7 = scalar_select 0, %s6, %s4
  // Predicated region
  $region2: #{patch_embedding_forward.1} parent=0 // pred_check
    _
  $region3: #{patch_embedding_forward.1} parent=0 // pred_check_branch
    %9 = sbr.rel (0) target = $region5
  $region4: #{patch_embedding_forward.1} parent=0 // pred_region
    _
  $region5: #{patch_embedding_forward.1} parent=0 // pred_fallthru
    _
  // Predicated region
  $region6: #{patch_embedding_forward.1} parent=0 // pred_check
    _
  $region7: #{patch_embedding_forward.1} parent=0 // pred_check_branch
    %11 = sbr.rel (0) target = $region9
  $region8: #{patch_embedding_forward.1} parent=0 // pred_region
    _
  $region9: #{patch_embedding_forward.1} parent=0 // pred_fallthru
    _
  // Predicated region
  $region10: #{patch_embedding_forward.1} parent=0 // pred_check
    _
  $region11: #{patch_embedding_forward.1} parent=0 // pred_check_branch
    %13 = sbr.rel (0) target = $region13
  $region12: #{patch_embedding_forward.1} parent=0 // pred_region
    _
  $region13: #{patch_embedding_forward.1} parent=0 // pred_fallthru
    _
  %v15 = vld [vmem:[%s0] sm:$0xf]
  %v16 = vld [vmem:[%s0 + $0x4] sm:$0xf]
  %v17 = vld [vmem:[%s1] sm:$0xf]
  %v18 = vld [vmem:[%s1 + $0x4] sm:$0xf]
  %v19 = vld [vmem:[%s1 + $0x8] sm:$0xf]
  %v20 = vld [vmem:[%s1 + $0xc] sm:$0xf]
  %v21 = vld [vmem:[%s1 + $0x10] sm:$0xf]
  %v22 = vld [vmem:[%s1 + $0x14] sm:$0xf]
  %v23 = vld [vmem:[%s1 + $0x18] sm:$0xf]
  %v24 = vld [vmem:[%s1 + $0x1c] sm:$0xf]
  %v25 = vld [vmem:[%s1 + $0x20] sm:$0xf]
  %v26 = vld [vmem:[%s1 + $0x24] sm:$0xf]
  %v27 = vld [vmem:[%s1 + $0x28] sm:$0xf]
  %v28 = vld [vmem:[%s1 + $0x2c] sm:$0xf]
  %v29 = vld [vmem:[%s1 + $0x30] sm:$0xf]
  %v30 = vld [vmem:[%s1 + $0x34] sm:$0xf]
  %v31 = vld [vmem:[%s1 + $0x38] sm:$0xf]
  %v32 = vld [vmem:[%s1 + $0x3c] sm:$0xf]
  %v33 = vld [vmem:[%s2] sm:$0x1]
  %v35 = vlaneseq
  %v36 = vshrl.u32 %v35, 7
  %v37 = vsub.s32 0, %v36
  %v38 = vrot.slane %v33, %v37
  %v42 = vunpack.c.l.b16 %v15
  %v43 = vunpack.c.l.b16 %v16
  %v44 = vpack.c.b16 %v43, %v42
  %v62 = vunpack.c.l.b16 %v17
  %v63 = vunpack.c.l.b16 %v18
  %v64 = vunpack.c.l.b16 %v19
  %v65 = vunpack.c.l.b16 %v20
  %v66 = vunpack.c.l.b16 %v21
  %v67 = vunpack.c.l.b16 %v22
  %v68 = vunpack.c.l.b16 %v23
  %v69 = vunpack.c.l.b16 %v24
  %v70 = vunpack.c.l.b16 %v25
  %v71 = vunpack.c.l.b16 %v26
  %v72 = vunpack.c.l.b16 %v27
  %v73 = vunpack.c.l.b16 %v28
  %v74 = vunpack.c.l.b16 %v29
  %v75 = vunpack.c.l.b16 %v30
  %v76 = vunpack.c.l.b16 %v31
  %v77 = vunpack.c.l.b16 %v32
  %v78 = vpack.c.b16 %v63, %v62
  %v79 = vpack.c.b16 %v65, %v64
  %v80 = vpack.c.b16 %v67, %v66
  %v81 = vpack.c.b16 %v69, %v68
  %v82 = vpack.c.b16 %v71, %v70
  %v83 = vpack.c.b16 %v73, %v72
  %v84 = vpack.c.b16 %v75, %v74
  %v85 = vpack.c.b16 %v77, %v76
  %94 = vmatprep.subr.bf16.mxu0 0
  %95 = vmatpush1.bf16.msra.mxu0 %v78
  %96 = vmatprep.subr.bf16.mxu0 0
  %97 = vmatpush1.bf16.msra.mxu0 %v79
  %98 = vmatprep.subr.bf16.mxu0 0
  %99 = vmatpush1.bf16.msra.mxu0 %v80
  %100 = vmatprep.subr.bf16.mxu0 0
  %101 = vmatpush1.bf16.msra.mxu0 %v81
  %102 = vmatprep.subr.bf16.mxu0 0
  %103 = vmatpush1.bf16.msra.mxu0 %v82
  %104 = vmatprep.subr.bf16.mxu0 0
  %105 = vmatpush1.bf16.msra.mxu0 %v83
  %106 = vmatprep.subr.bf16.mxu0 0
  %107 = vmatpush1.bf16.msra.mxu0 %v84
  %108 = vmatprep.subr.bf16.mxu0 0
  %109 = vmatpush1.bf16.msra.mxu0 %v85
  %110 = vmatprep.subr.bf16.mxu0 0
  %111 = vmatpush1.bf16.msra.mxu0 0
  %112 = vmatprep.subr.bf16.mxu0 0
  %113 = vmatpush1.bf16.msra.mxu0 0
  %114 = vmatprep.subr.bf16.mxu0 0
  %115 = vmatpush1.bf16.msra.mxu0 0
  %116 = vmatprep.subr.bf16.mxu0 0
  %117 = vmatpush1.bf16.msra.mxu0 0
  %118 = vmatprep.subr.bf16.mxu0 0
  %119 = vmatpush1.bf16.msra.mxu0 0
  %120 = vmatprep.subr.bf16.mxu0 0
  %121 = vmatpush1.bf16.msra.mxu0 0
  %122 = vmatprep.subr.bf16.mxu0 0
  %123 = vmatpush1.bf16.msra.mxu0 0
  %124 = vmatprep.subr.bf16.mxu0 0
  %125 = vmatpush1.bf16.msra.mxu0 0
  %126 = vmatprep.mubr.bf16.mxu0 0
  %127 = vmatmul.mubr.bf16.gmra.mrb[0].mxu0 %v44
  %v128 = vpop.f32.mrb[0].mxu0
  %v129 = vadd.f32 %v38, %v128
  %v130 = vpop.f32.mrb[0].mxu0
  %v131 = vpop.f32.mrb[0].mxu0
  %v132 = vadd.f32 %v38, %v131
  %v133 = vpop.f32.mrb[0].mxu0
  %134 = vdwg.mxu0
  %135 = vst [vmem:[%s3] sm:$0xff] %v129
  %136 = vst [vmem:[%s3 + $0x8] sm:$0xff] %v132
  // Predicated region
  $region14: #{patch_embedding_forward.1} parent=0 // pred_check
    _
  $region15: #{patch_embedding_forward.1} parent=0 // pred_check_branch
    %138 = sbr.rel (0) target = $region17
  $region16: #{patch_embedding_forward.1} parent=0 // pred_region
    _
  $region17: #{patch_embedding_forward.1} parent=0 // pred_fallthru
    _
  // Predicated region
  $region18: #{patch_embedding_forward.1} parent=0 // pred_check
    _
  $region19: #{patch_embedding_forward.1} parent=0 // pred_check_branch
    %140 = sbr.rel (0) target = $region21
  $region20: #{patch_embedding_forward.1} parent=0 // pred_region
    _
  $region21: #{patch_embedding_forward.1} parent=0 // pred_fallthru
    _

</llo_original>
